<compile_context>
chip_gen: v6e
topology: v6e:2x2x1
jax: 0.10.0
libtpu: 0.0.40
codegen_flags: <defaults>
</compile_context>

<pallas_src>
import functools

import jax
import jax.numpy as jnp
from jax.experimental import pallas as pl
from jax.experimental.pallas import tpu as pltpu


def _convt_in_act_kernel(x_ref, w_ref, mask_ref, o_ref, *,
                         K, Wp, HoWp, inv_count, activation):
    """One batch element: transposed-conv (as correlation) + instance-norm + activation.

    x_ref   : (1, Cin_p, Lin)        flattened dilated+padded input (row-major H*W, +K-1 tail zeros)
    w_ref   : (Cout, K*K*Cin_p)      flipped kernel, column order (kh, kw, ci)
    mask_ref: (1, HoWp)              1.0 on valid output columns (col % Wp < Wo), else 0.0
    o_ref   : (1, Cout, HoWp)        lane-dense flat output (garbage columns cropped by wrapper)
    """
    # im2col: K*K shifted lane-slices stacked along the contraction (sublane) axis.
    pieces = []
    for kh in range(K):
        for kw in range(K):
            d = kh * Wp + kw
            pieces.append(x_ref[0, :, d:d + HoWp])          # (Cin_p, HoWp)
    cols = pieces[0] if len(pieces) == 1 else jnp.concatenate(pieces, axis=0)

    # Single MXU contraction: (Cout, K*K*Cin_p) @ (K*K*Cin_p, HoWp) -> (Cout, HoWp).
    acc = jnp.dot(w_ref[...], cols, preferred_element_type=jnp.float32)

    # InstanceNorm2d (affine=False, eps=1e-5, biased variance) over valid spatial positions.
    mask = mask_ref[...]                                     # (1, HoWp)
    mean = jnp.sum(acc * mask, axis=1, keepdims=True) * inv_count   # (Cout, 1)
    cen = (acc - mean) * mask
    var = jnp.sum(cen * cen, axis=1, keepdims=True) * inv_count
    y = cen * jax.lax.rsqrt(var + 1e-5)

    if activation == "tanh":
        y = jnp.tanh(y)
    else:
        y = jnp.maximum(y, 0.0)

    o_ref[...] = y.reshape(o_ref.shape).astype(o_ref.dtype)


def conv_transpose_block(x_nchw, weight, bias, *, stride, padding=1,
                         last_layer=False):
    """Forward pass of ConvTransposeBlock.

    x_nchw : (N, Cin, H, W)          float32
    weight : (Cin, Cout, K, K)       PyTorch ConvTranspose2d weight layout
    bias   : (Cout,)                 (mathematically cancelled by InstanceNorm; unused)
    returns: (N, Cout, Ho, Wo) with Ho = (H-1)*stride - 2*padding + K
    """
    N, Cin, H, W = x_nchw.shape
    Cin_w, Cout, K, K2 = weight.shape
    assert Cin == Cin_w and K == K2
    del bias  # exactly cancelled by InstanceNorm's per-channel mean subtraction

    s = stride
    pad = K - 1 - padding
    assert pad >= 0
    Hd, Wd = (H - 1) * s + 1, (W - 1) * s + 1
    Hp, Wp = Hd + 2 * pad, Wd + 2 * pad
    Ho, Wo = Hp - (K - 1), Wp - (K - 1)
    HoWp = Ho * Wp
    Lin = Hp * Wp + (K - 1)

    # Pad Cin up to a full f32 sublane tile so the in-kernel concat is tile-aligned.
    Cin_p = ((Cin + 7) // 8) * 8

    # ---- glue (plain JAX, NCHW throughout; no layout transposes) ----
    x = x_nchw
    if Cin_p != Cin:
        x = jnp.pad(x, ((0, 0), (0, Cin_p - Cin), (0, 0), (0, 0)))
    if s > 1:
        xd = jnp.zeros((N, Cin_p, Hd, Wd), x.dtype).at[:, :, ::s, ::s].set(x)
    else:
        xd = x
    xp = jnp.pad(xd, ((0, 0), (0, 0), (pad, pad), (pad, pad)))          # (N, Cin_p, Hp, Wp)
    xf = jnp.pad(xp.reshape(N, Cin_p, Hp * Wp), ((0, 0), (0, 0), (0, K - 1)))  # (N, Cin_p, Lin)

    # Weight: flip taps, reorder to (Cout, K, K, Cin), pad Cin, flatten -> (Cout, K*K*Cin_p).
    wf = weight[:, :, ::-1, ::-1]                     # (Cin, Cout, K, K)
    wm = jnp.transpose(wf, (1, 2, 3, 0))              # (Cout, K, K, Cin)
    if Cin_p != Cin:
        wm = jnp.pad(wm, ((0, 0), (0, 0), (0, 0), (0, Cin_p - Cin)))
    wm = wm.reshape(Cout, K * K * Cin_p).astype(jnp.float32)

    # Valid-column mask for the instance-norm statistics.
    mask = ((jnp.arange(HoWp) % Wp) < Wo).astype(jnp.float32).reshape(1, HoWp)

    kernel = functools.partial(
        _convt_in_act_kernel, K=K, Wp=Wp, HoWp=HoWp,
        inv_count=1.0 / float(Ho * Wo),
        activation="tanh" if last_layer else "relu")

    out_flat = pl.pallas_call(
        kernel,
        out_shape=jax.ShapeDtypeStruct((N, Cout, HoWp), jnp.float32),
        grid=(N,),
        in_specs=[
            pl.BlockSpec((1, Cin_p, Lin), lambda n: (n, 0, 0)),
            pl.BlockSpec((Cout, K * K * Cin_p), lambda n: (0, 0)),
            pl.BlockSpec((1, HoWp), lambda n: (0, 0)),
        ],
        out_specs=pl.BlockSpec((1, Cout, HoWp), lambda n: (n, 0, 0)),
        compiler_params=pltpu.CompilerParams(
            dimension_semantics=("parallel",)),
    )(xf, wm, mask)

    # Free reshape + tiny crop of the K-1 garbage columns per row -> NCHW output.
    out = out_flat.reshape(N, Cout, Ho, Wp)[:, :, :, :Wo]
    return out


def _reference(x_nchw, weight, bias, *, stride, padding, last_layer):
    """Pure-JAX reference (lax conv path) matching the PyTorch module."""
    K = weight.shape[2]
    pad = K - 1 - padding
    w_conv = jnp.transpose(weight, (1, 0, 2, 3))[:, :, ::-1, ::-1]  # OIHW, flipped
    y = jax.lax.conv_general_dilated(
        x_nchw, w_conv, window_strides=(1, 1),
        padding=[(pad, pad), (pad, pad)],
        lhs_dilation=(stride, stride),
        dimension_numbers=("NCHW", "OIHW", "NCHW"))
    y = y + bias[None, :, None, None]
    mean = y.mean(axis=(2, 3), keepdims=True)
    var = y.var(axis=(2, 3), keepdims=True)
    y = (y - mean) / jnp.sqrt(var + 1e-5)
    return jnp.tanh(y) if last_layer else jnp.maximum(y, 0.0)


if __name__ == "__main__":
    # Small shapes consistent with the module: batch=2, Cin=4, 16x16 spatial,
    # Cout=8, stride=2 (upsampling decoder block), kernel=3, padding=1.
    N, Cin, H, W = 2, 4, 16, 16
    Cout, K, stride, padding = 8, 3, 2, 1
    last_layer = False

    key = jax.random.PRNGKey(0)
    kx, kw, kb = jax.random.split(key, 3)

    x = jax.random.normal(kx, (N, Cin, H, W), dtype=jnp.float32)
    bound = 1.0 / (Cin * K * K) ** 0.5
    weight = jax.random.uniform(kw, (Cin, Cout, K, K), jnp.float32,
                                minval=-bound, maxval=bound)
    bias = jax.random.uniform(kb, (Cout,), jnp.float32,
                              minval=-bound, maxval=bound)

    out = conv_transpose_block(x, weight, bias, stride=stride,
                               padding=padding, last_layer=last_layer)
    out = jax.block_until_ready(out)

    ref = _reference(x, weight, bias, stride=stride, padding=padding,
                     last_layer=last_layer)
    Ho = (H - 1) * stride - 2 * padding + K
    Wo = (W - 1) * stride - 2 * padding + K
    assert out.shape == (N, Cout, Ho, Wo), out.shape
    assert jnp.allclose(out, ref, atol=2e-2, rtol=2e-2), \
        float(jnp.max(jnp.abs(out - ref)))

    print("KERNEL_OK")
</pallas_src>

<mosaic_0001>
module attributes {stable_mosaic.version = 11 : i64} {
  func.func @_convt_in_act_kernel(%arg0: i32, %arg1: memref<1x8x1091xf32, #tpu.memory_space<vmem>>, %arg2: memref<8x72xf32, #tpu.memory_space<vmem>>, %arg3: memref<1x1023xf32, #tpu.memory_space<vmem>>, %arg4: memref<1x8x1023xf32, #tpu.memory_space<vmem>>) attributes {dimension_semantics = [#tpu.dimension_semantics<parallel>], iteration_bounds = array<i64: 2>, scalar_prefetch = 0 : i64, scratch_operands = 0 : i64, tpu.core_type = #tpu.core_type<tc>, window_params = [{transform_indices = @transform_0, window_bounds = array<i64: 1, 8, 1091>}, {pipeline_mode = #tpu.pipeline_mode<synchronous>, transform_indices = @transform_1, window_bounds = array<i64: 8, 72>}, {pipeline_mode = #tpu.pipeline_mode<synchronous>, transform_indices = @transform_2, window_bounds = array<i64: 1, 1023>}, {transform_indices = @transform_3, window_bounds = array<i64: 1, 8, 1023>}]} {
    %c0 = arith.constant 0 : index
    %c0_0 = arith.constant 0 : index
    %c0_1 = arith.constant 0 : index
    %0 = vector.load %arg1[%c0, %c0_0, %c0_1] : memref<1x8x1091xf32, #tpu.memory_space<vmem>>, vector<1x8x1023xf32>
    %1 = vector.shape_cast %0 : vector<1x8x1023xf32> to vector<8x1023xf32>
    %c0_2 = arith.constant 0 : index
    %c0_3 = arith.constant 0 : index
    %c1 = arith.constant 1 : index
    %2 = vector.load %arg1[%c0_2, %c0_3, %c1] : memref<1x8x1091xf32, #tpu.memory_space<vmem>>, vector<1x8x1023xf32>
    %3 = vector.shape_cast %2 : vector<1x8x1023xf32> to vector<8x1023xf32>
    %c0_4 = arith.constant 0 : index
    %c0_5 = arith.constant 0 : index
    %c2 = arith.constant 2 : index
    %4 = vector.load %arg1[%c0_4, %c0_5, %c2] : memref<1x8x1091xf32, #tpu.memory_space<vmem>>, vector<1x8x1023xf32>
    %5 = vector.shape_cast %4 : vector<1x8x1023xf32> to vector<8x1023xf32>
    %c0_6 = arith.constant 0 : index
    %c0_7 = arith.constant 0 : index
    %c33 = arith.constant 33 : index
    %6 = vector.load %arg1[%c0_6, %c0_7, %c33] : memref<1x8x1091xf32, #tpu.memory_space<vmem>>, vector<1x8x1023xf32>
    %7 = vector.shape_cast %6 : vector<1x8x1023xf32> to vector<8x1023xf32>
    %c0_8 = arith.constant 0 : index
    %c0_9 = arith.constant 0 : index
    %c34 = arith.constant 34 : index
    %8 = vector.load %arg1[%c0_8, %c0_9, %c34] : memref<1x8x1091xf32, #tpu.memory_space<vmem>>, vector<1x8x1023xf32>
    %9 = vector.shape_cast %8 : vector<1x8x1023xf32> to vector<8x1023xf32>
    %c0_10 = arith.constant 0 : index
    %c0_11 = arith.constant 0 : index
    %c35 = arith.constant 35 : index
    %10 = vector.load %arg1[%c0_10, %c0_11, %c35] : memref<1x8x1091xf32, #tpu.memory_space<vmem>>, vector<1x8x1023xf32>
    %11 = vector.shape_cast %10 : vector<1x8x1023xf32> to vector<8x1023xf32>
    %c0_12 = arith.constant 0 : index
    %c0_13 = arith.constant 0 : index
    %c66 = arith.constant 66 : index
    %12 = vector.load %arg1[%c0_12, %c0_13, %c66] : memref<1x8x1091xf32, #tpu.memory_space<vmem>>, vector<1x8x1023xf32>
    %13 = vector.shape_cast %12 : vector<1x8x1023xf32> to vector<8x1023xf32>
    %c0_14 = arith.constant 0 : index
    %c0_15 = arith.constant 0 : index
    %c67 = arith.constant 67 : index
    %14 = vector.load %arg1[%c0_14, %c0_15, %c67] : memref<1x8x1091xf32, #tpu.memory_space<vmem>>, vector<1x8x1023xf32>
    %15 = vector.shape_cast %14 : vector<1x8x1023xf32> to vector<8x1023xf32>
    %c0_16 = arith.constant 0 : index
    %c0_17 = arith.constant 0 : index
    %c68 = arith.constant 68 : index
    %16 = vector.load %arg1[%c0_16, %c0_17, %c68] : memref<1x8x1091xf32, #tpu.memory_space<vmem>>, vector<1x8x1023xf32>
    %17 = vector.shape_cast %16 : vector<1x8x1023xf32> to vector<8x1023xf32>
    %18 = tpu.concatenate %1, %3, %5, %7, %9, %11, %13, %15, %17 in 0 : vector<8x1023xf32>, vector<8x1023xf32>, vector<8x1023xf32>, vector<8x1023xf32>, vector<8x1023xf32>, vector<8x1023xf32>, vector<8x1023xf32>, vector<8x1023xf32>, vector<8x1023xf32> -> vector<72x1023xf32>
    %c0_18 = arith.constant 0 : index
    %c0_19 = arith.constant 0 : index
    %19 = vector.load %arg2[%c0_18, %c0_19] : memref<8x72xf32, #tpu.memory_space<vmem>>, vector<8x72xf32>
    %cst = arith.constant dense<0.000000e+00> : vector<8x1023xf32>
    %20 = tpu.matmul %19, %18, %cst {dimension_numbers = #tpu.dot_dimension_numbers<[1], [0], [0], [1], [0, 0, 1, 1], [], []>} : vector<8x72xf32>, vector<72x1023xf32>, vector<8x1023xf32> -> vector<8x1023xf32>
    %c0_20 = arith.constant 0 : index
    %c0_21 = arith.constant 0 : index
    %21 = vector.load %arg3[%c0_20, %c0_21] : memref<1x1023xf32, #tpu.memory_space<vmem>>, vector<1x1023xf32>
    %22 = vector.broadcast %21 : vector<1x1023xf32> to vector<8x1023xf32>
    %23 = arith.mulf %20, %22 : vector<8x1023xf32>
    %cst_22 = arith.constant dense<0.000000e+00> : vector<8xf32>
    %24 = vector.multi_reduction <add>, %23, %cst_22 [1] : vector<8x1023xf32> to vector<8xf32>
    %25 = vector.shape_cast %24 : vector<8xf32> to vector<8x1xf32>
    %cst_23 = arith.constant 0.00104058278 : f32
    %26 = vector.broadcast %cst_23 : f32 to vector<8x1xf32>
    %27 = arith.mulf %25, %26 : vector<8x1xf32>
    %28 = vector.broadcast %27 : vector<8x1xf32> to vector<8x1023xf32>
    %29 = arith.subf %20, %28 : vector<8x1023xf32>
    %30 = vector.broadcast %21 : vector<1x1023xf32> to vector<8x1023xf32>
    %31 = arith.mulf %29, %30 : vector<8x1023xf32>
    %32 = arith.mulf %31, %31 : vector<8x1023xf32>
    %cst_24 = arith.constant dense<0.000000e+00> : vector<8xf32>
    %33 = vector.multi_reduction <add>, %32, %cst_24 [1] : vector<8x1023xf32> to vector<8xf32>
    %34 = vector.shape_cast %33 : vector<8xf32> to vector<8x1xf32>
    %cst_25 = arith.constant 0.00104058278 : f32
    %35 = vector.broadcast %cst_25 : f32 to vector<8x1xf32>
    %36 = arith.mulf %34, %35 : vector<8x1xf32>
    %cst_26 = arith.constant 9.99999974E-6 : f32
    %37 = vector.broadcast %cst_26 : f32 to vector<8x1xf32>
    %38 = arith.addf %36, %37 : vector<8x1xf32>
    %39 = math.rsqrt %38 : vector<8x1xf32>
    %40 = vector.broadcast %39 : vector<8x1xf32> to vector<8x1023xf32>
    %41 = arith.mulf %31, %40 : vector<8x1023xf32>
    %cst_27 = arith.constant 0.000000e+00 : f32
    %42 = vector.broadcast %cst_27 : f32 to vector<8x1023xf32>
    %43 = arith.maximumf %41, %42 : vector<8x1023xf32>
    %44 = vector.shape_cast %43 : vector<8x1023xf32> to vector<1x8x1023xf32>
    %c0_28 = arith.constant 0 : index
    %c0_29 = arith.constant 0 : index
    %c0_30 = arith.constant 0 : index
    %45 = vector.load %arg4[%c0_28, %c0_29, %c0_30] : memref<1x8x1023xf32, #tpu.memory_space<vmem>>, vector<1x8x1023xf32>
    tpu.vector_store %arg4[%c0_28, %c0_29, %c0_30], %44 {strides = array<i32>} : memref<1x8x1023xf32, #tpu.memory_space<vmem>>, vector<1x8x1023xf32>,
    return
  }
  func.func @transform_0(%arg0: i32) -> (i32, i32, i32) {
    %c0_i32 = arith.constant 0 : i32
    %c0_i32_0 = arith.constant 0 : i32
    %c0_i32_1 = arith.constant 0 : i32
    return %arg0, %c0_i32, %c0_i32_0 : i32, i32, i32
  }
  func.func @transform_1(%arg0: i32) -> (i32, i32) {
    %c0_i32 = arith.constant 0 : i32
    %c0_i32_0 = arith.constant 0 : i32
    %c0_i32_1 = arith.constant 0 : i32
    return %c0_i32, %c0_i32_0 : i32, i32
  }
  func.func @transform_2(%arg0: i32) -> (i32, i32) {
    %c0_i32 = arith.constant 0 : i32
    %c0_i32_0 = arith.constant 0 : i32
    %c0_i32_1 = arith.constant 0 : i32
    return %c0_i32, %c0_i32_0 : i32, i32
  }
  func.func @transform_3(%arg0: i32) -> (i32, i32, i32) {
    %c0_i32 = arith.constant 0 : i32
    %c0_i32_0 = arith.constant 0 : i32
    %c0_i32_1 = arith.constant 0 : i32
    return %arg0, %c0_i32, %c0_i32_0 : i32, i32, i32
  }
}

</mosaic_0001>

<llo_original>
// kernel: tpu_custom_call.1
$region0: #{tpu_custom_call.1}
  #allocation0 [shape = 'u32[]', space=smem, size = 0x4, offset = 0x4, fixed_abs, tag = 'smem constant byte address 0x4 - core index']
  #allocation1 [shape = 'u32[144,128]{1,0:T(1,128)}', space=vmem, size = 0x12000, scoped, tag = 'internal scratch']
  %s0 = inlined_call_operand.hbm [shape: f32[2,8,1091], index: 0, kind: input, shape index: {}]
  %s1 = inlined_call_operand.hbm [shape: f32[8,72], index: 1, kind: input, shape index: {}]
  %s2 = inlined_call_operand.hbm [shape: f32[1,1023], index: 2, kind: input, shape index: {}]
  %s3 = inlined_call_operand.hbm [shape: f32[2,8,1023], index: 3, kind: output, shape index: {}]
  %s4 = sld [smem:[#allocation0]]
  $region57: #{tpu_custom_call.1} parent=0
    _
  %s6 = ssub.s32 1, %s4
  %s7 = scalar_select 0, %s6, %s4
  $region1: #{tpu_custom_call.1} parent=0
    #allocation2 [shape = 'u8[73728]{0}', space=vmem, size = 0x12000, scoped, tag = 'input window, operand 0']
    #allocation3 [shape = 's32[2]{0}', space=sflag, size = 0x8, scoped, tag = 'scoped memory for tpu_custom_call.1']
    #allocation4 [shape = 's32[2]{0}', space=sflag, size = 0x8, scoped, tag = 'scoped memory for tpu_custom_call.1']
    #allocation5 [shape = 'u8[4096]{0}', space=vmem, size = 0x1000, scoped, tag = 'input window, operand 1, single buffered']
    #allocation6 [shape = 's32[1]{0}', space=sflag, size = 0x4, scoped, tag = 'scoped memory for tpu_custom_call.1']
    #allocation7 [shape = 'u8[4096]{0}', space=vmem, size = 0x1000, scoped, tag = 'input window, operand 2, single buffered']
    #allocation8 [shape = 'u8[65536]{0}', space=vmem, size = 0x10000, scoped, tag = 'output window, operand 0']
    %8 = vsyncpa [#allocation3], 0
    %s9 = scalar_lea.sflag [#allocation3], 1
    %10 = vsyncpa %s9, 0
    %11 = vsyncpa [#allocation6], 0
    %12 = vsyncpa [#allocation4], 0
    %s13 = scalar_lea.sflag [#allocation4], 1
    %14 = vsyncpa %s13, 0
    loop: start=0, step=1, limit=4
    $region2: #{tpu_custom_call.1} parent=1 // loop_pre_header
      _
    $region3: #{tpu_custom_call.1} parent=1 // loop_header
      %s16 = sphi 0, %s20
      %p17 = scmp.ge.s32.totalorder %s16, 4
      %s26 = sphi 0, %s28
      %s29 = sphi 0, %s26
      %s30 = sphi 0, %s29
      %s46 = sphi 0, %s30
      %s50 = sphi 0, %s50
      %s52 = sphi 0, %s50
      %s53 = sphi 0, %s52
      %s67 = sphi 0, %s53
      %s71 = sphi 0, %s71
      %s73 = sphi 0, %s71
      %s74 = sphi 0, %s73
      %s88 = sphi 0, %s74
      %s94 = sphi 0, %s96
      %s97 = sphi 0, %s94
      %s98 = sphi 0, %s97
      %s114 = sphi 0, %s98
    $region4: #{tpu_custom_call.1} parent=1 // loop_header_branch
      %19 = sbr.rel (%p17) target = $region8
    $region5: #{tpu_custom_call.1} parent=1 // loop_body
      %s21 = ssub.s32 %s16, 1
      %s22 = ssub.s32 %s16, 2
      %s23 = sadd.s32 %s16, 1
      %s24 = ssub.s32 %s16, %s23
      %p25 = scmp.eq.s32.totalorder %s24, 0
      %s27 = sadd.s32 %s26, 1
      %s28 = scalar_select %p25, %s26, %s27
      %p31 = pneg %p25
      %p32 = scmp.eq.s32.totalorder %s16, 1
      %p33 = por %p31, %p32
      %p34 = scmp.ne.s32.totalorder %s26, %s29
      %p35 = scmp.eq.s32.totalorder %s16, 0
      %p36 = por %p34, %p35
      %p37 = scmp.ne.s32.totalorder %s26, %s29
      %p38 = scmp.eq.s32.totalorder %s21, 1
      %p39 = por %p37, %p38
      %p40 = scmp.ne.s32.totalorder %s29, %s30
      %p41 = scmp.eq.s32.totalorder %s21, 0
      %p42 = por %p40, %p41
      %p43 = scmp.ne.s32.totalorder %s29, %s30
      %p44 = scmp.eq.s32.totalorder %s22, 1
      %p45 = por %p43, %p44
      %p47 = scmp.ne.s32.totalorder %s30, %s46
      %p48 = scmp.eq.s32.totalorder %s22, 0
      %p49 = por %p47, %p48
      %s51 = sadd.s32 %s50, 1
      %p54 = scmp.eq.s32.totalorder %s16, 1
      %p55 = scmp.ne.s32.totalorder %s50, %s52
      %p56 = scmp.eq.s32.totalorder %s16, 0
      %p57 = por %p55, %p56
      %p58 = scmp.ne.s32.totalorder %s50, %s52
      %p59 = scmp.eq.s32.totalorder %s21, 1
      %p60 = por %p58, %p59
      %p61 = scmp.ne.s32.totalorder %s52, %s53
      %p62 = scmp.eq.s32.totalorder %s21, 0
      %p63 = por %p61, %p62
      %p64 = scmp.ne.s32.totalorder %s52, %s53
      %p65 = scmp.eq.s32.totalorder %s22, 1
      %p66 = por %p64, %p65
      %p68 = scmp.ne.s32.totalorder %s53, %s67
      %p69 = scmp.eq.s32.totalorder %s22, 0
      %p70 = por %p68, %p69
      %s72 = sadd.s32 %s71, 1
      %p75 = scmp.eq.s32.totalorder %s16, 1
      %p76 = scmp.ne.s32.totalorder %s71, %s73
      %p77 = scmp.eq.s32.totalorder %s16, 0
      %p78 = por %p76, %p77
      %p79 = scmp.ne.s32.totalorder %s71, %s73
      %p80 = scmp.eq.s32.totalorder %s21, 1
      %p81 = por %p79, %p80
      %p82 = scmp.ne.s32.totalorder %s73, %s74
      %p83 = scmp.eq.s32.totalorder %s21, 0
      %p84 = por %p82, %p83
      %p85 = scmp.ne.s32.totalorder %s73, %s74
      %p86 = scmp.eq.s32.totalorder %s22, 1
      %p87 = por %p85, %p86
      %p89 = scmp.ne.s32.totalorder %s74, %s88
      %p90 = scmp.eq.s32.totalorder %s22, 0
      %p91 = por %p89, %p90
      %s92 = ssub.s32 %s16, %s23
      %p93 = scmp.eq.s32.totalorder %s92, 0
      %s95 = sadd.s32 %s94, 1
      %s96 = scalar_select %p93, %s94, %s95
      %p99 = pneg %p93
      %p100 = scmp.eq.s32.totalorder %s16, 1
      %p101 = por %p99, %p100
      %p102 = scmp.ne.s32.totalorder %s94, %s97
      %p103 = scmp.eq.s32.totalorder %s16, 0
      %p104 = por %p102, %p103
      %p105 = scmp.ne.s32.totalorder %s94, %s97
      %p106 = scmp.eq.s32.totalorder %s21, 1
      %p107 = por %p105, %p106
      %p108 = scmp.ne.s32.totalorder %s97, %s98
      %p109 = scmp.eq.s32.totalorder %s21, 0
      %p110 = por %p108, %p109
      %p111 = scmp.ne.s32.totalorder %s97, %s98
      %p112 = scmp.eq.s32.totalorder %s22, 1
      %p113 = por %p111, %p112
      %p115 = scmp.ne.s32.totalorder %s98, %s114
      %p116 = scmp.eq.s32.totalorder %s22, 0
      %p117 = por %p115, %p116
      %p118 = scmp.le.s32.totalorder 1, %s16
      %p119 = scmp.lt.s32.totalorder %s16, 3
      %p120 = pnand %p118, %p119
      %p121 = pneg %p120
      // Predicated region
      $region9: #{tpu_custom_call.1} parent=5 // pred_check
        _
      $region10: #{tpu_custom_call.1} parent=5 // pred_check_branch
        %123 = sbr.rel (%p120) target = $region12
      $region11: #{tpu_custom_call.1} parent=5 // pred_region
        %s124 = ssub.s32 %s16, 1
        // Predicated region
        $region13: #{tpu_custom_call.1} parent=11 // pred_check
          %p125 = pneg %p63
        $region14: #{tpu_custom_call.1} parent=11 // pred_check_branch
          %127 = sbr.rel (%p125) target = $region16
        $region15: #{tpu_custom_call.1} parent=11 // pred_region
          %s129 = ssub.s32 128, 128
          %130 = vsyncadd [#allocation6], %s129
          %s132 = sshll.u32 [#allocation5], 4
          %s133 = int_to_ptr.vmem [resolvable:$true] %s132
          %135 = dma.hbm_to_vmem [thread:$0]  %s1, 128, %s133, [#allocation6]
        $region16: #{tpu_custom_call.1} parent=11 // pred_fallthru
          _
        // Predicated region
        $region17: #{tpu_custom_call.1} parent=11 // pred_check
          %p136 = pneg %p84
        $region18: #{tpu_custom_call.1} parent=11 // pred_check_branch
          %138 = sbr.rel (%p136) target = $region20
        $region19: #{tpu_custom_call.1} parent=11 // pred_region
          %s140 = ssub.s32 128, 128
          %141 = vsyncadd [#allocation6], %s140
          %s143 = sshll.u32 [#allocation7], 4
          %s144 = int_to_ptr.vmem [resolvable:$true] %s143
          %146 = dma.hbm_to_vmem [thread:$0]  %s2, 128, %s144, [#allocation6]
        $region20: #{tpu_custom_call.1} parent=11 // pred_fallthru
          _
      $region12: #{tpu_custom_call.1} parent=5 // pred_fallthru
        _
      %p147 = scmp.lt.s32.totalorder %s16, 2
      // Predicated region
      $region21: #{tpu_custom_call.1} parent=5 // pred_check
        %p148 = pneg %p147
      $region22: #{tpu_custom_call.1} parent=5 // pred_check_branch
        %150 = sbr.rel (%p148) target = $region24
      $region23: #{tpu_custom_call.1} parent=5 // pred_region
        // Predicated region
        $region25: #{tpu_custom_call.1} parent=23 // pred_check
          %p151 = pneg %p36
        $region26: #{tpu_custom_call.1} parent=23 // pred_check_branch
          %153 = sbr.rel (%p151) target = $region28
        $region27: #{tpu_custom_call.1} parent=23 // pred_region
          %s154 = sand.u32 %s26, 1
          %s155 = scalar_lea.sflag [#allocation3], %s154
          %s156 = sand.u32 %s26, 1
          %s157 = smul.addr %s156, 72
          %s158 = scalar_lea.vmem [#allocation2], %s157
          %s160 = ssub.s32 1152, 1152
          %161 = vsyncadd %s155, %s160
          %s162 = smul.addr %s16, 9
          %s163 = smul.addr %s162, 128
          %s164 = scalar_lea.hbm %s0, %s163
          %s166 = sshll.u32 %s158, 4
          %s167 = int_to_ptr.vmem [resolvable:$true] %s166
          %169 = dma.hbm_to_vmem [thread:$0]  %s164, 1152, %s167, %s155
        $region28: #{tpu_custom_call.1} parent=23 // pred_fallthru
          _
      $region24: #{tpu_custom_call.1} parent=5 // pred_fallthru
        _
      %p170 = scmp.le.s32.totalorder 1, %s16
      %p171 = scmp.lt.s32.totalorder %s16, 3
      %p172 = pnand %p170, %p171
      %p173 = pneg %p172
      // Predicated region
      $region29: #{tpu_custom_call.1} parent=5 // pred_check
        _
      $region30: #{tpu_custom_call.1} parent=5 // pred_check_branch
        %175 = sbr.rel (%p172) target = $region32
      $region31: #{tpu_custom_call.1} parent=5 // pred_region
        %s176 = ssub.s32 %s16, 1
        %s177 = sand.u32 %s29, 1
        %s178 = scalar_lea.sflag [#allocation3], %s177
        %s179 = sand.u32 %s29, 1
        %s180 = smul.addr %s179, 72
        %s181 = scalar_lea.vmem [#allocation2], %s180
        // Predicated region
        $region33: #{tpu_custom_call.1} parent=31 // pred_check
          %p182 = pneg %p42
        $region34: #{tpu_custom_call.1} parent=31 // pred_check_branch
          %184 = sbr.rel (%p182) target = $region36
        $region35: #{tpu_custom_call.1} parent=31 // pred_region
          %185 = dma.done %s178, 1152
        $region36: #{tpu_custom_call.1} parent=31 // pred_fallthru
          _
        // Predicated region
        $region37: #{tpu_custom_call.1} parent=31 // pred_check
          %p186 = pneg %p63
        $region38: #{tpu_custom_call.1} parent=31 // pred_check_branch
          %188 = sbr.rel (%p186) target = $region40
        $region39: #{tpu_custom_call.1} parent=31 // pred_region
          %189 = dma.done [#allocation6], 128
        $region40: #{tpu_custom_call.1} parent=31 // pred_fallthru
          _
        // Predicated region
        $region41: #{tpu_custom_call.1} parent=31 // pred_check
          %p190 = pneg %p84
        $region42: #{tpu_custom_call.1} parent=31 // pred_check_branch
          %192 = sbr.rel (%p190) target = $region44
        $region43: #{tpu_custom_call.1} parent=31 // pred_region
          %193 = dma.done [#allocation6], 128
        $region44: #{tpu_custom_call.1} parent=31 // pred_fallthru
          _
        %s194 = sand.u32 %s29, 1
        %s195 = scalar_lea.sflag [#allocation3], %s194
        %s196 = sand.u32 %s29, 1
        %s197 = smul.addr %s196, 72
        %s198 = scalar_lea.vmem [#allocation2], %s197
        %p199 = pneg %p42
        %p200 = pneg %p39
        %p201 = pneg %p63
        %p202 = pneg %p60
        %p203 = pneg %p84
        %p204 = pneg %p81
        %p205 = pneg %p110
        %p206 = pneg %p107
        %s207 = sand.u32 %s97, 1
        %s208 = scalar_lea.sflag [#allocation4], %s207
        %s209 = sand.u32 %s97, 1
        %s210 = smul.addr %s209, 64
        %s211 = scalar_lea.vmem [#allocation8], %s210
        %v212 = vld [vmem:[%s181] sm:$0xff]
        %v213 = vld [vmem:[%s181 + $0x8] sm:$0xff]
        %v214 = vld [vmem:[%s181 + $0x10] sm:$0xff]
        %v215 = vld [vmem:[%s181 + $0x18] sm:$0xff]
        %v216 = vld [vmem:[%s181 + $0x20] sm:$0xff]
        %v217 = vld [vmem:[%s181 + $0x28] sm:$0xff]
        %v218 = vld [vmem:[%s181 + $0x30] sm:$0xff]
        %v219 = vld [vmem:[%s181 + $0x38] sm:$0xff]
        %v220 = vld [vmem:[%s181 + $0x40] sm:$0xff]
        %229 = vrot.lane.b32.xlu0 %v212, 127
        %v230 = vpop.permute.xlu0 %229
        %231 = vrot.lane.b32.xlu0 %v213, 127
        %v232 = vpop.permute.xlu0 %231
        %233 = vrot.lane.b32.xlu0 %v214, 127
        %v234 = vpop.permute.xlu0 %233
        %235 = vrot.lane.b32.xlu0 %v215, 127
        %v236 = vpop.permute.xlu0 %235
        %237 = vrot.lane.b32.xlu0 %v216, 127
        %v238 = vpop.permute.xlu0 %237
        %239 = vrot.lane.b32.xlu0 %v217, 127
        %v240 = vpop.permute.xlu0 %239
        %241 = vrot.lane.b32.xlu0 %v218, 127
        %v242 = vpop.permute.xlu0 %241
        %243 = vrot.lane.b32.xlu0 %v219, 127
        %v244 = vpop.permute.xlu0 %243
        %vm245 = vcmask 1039360
        %v246 = vsel %vm245, %v230, %v232
        %v247 = vsel %vm245, %v232, %v234
        %v248 = vsel %vm245, %v234, %v236
        %v249 = vsel %vm245, %v236, %v238
        %v250 = vsel %vm245, %v238, %v240
        %v251 = vsel %vm245, %v240, %v242
        %v252 = vsel %vm245, %v242, %v244
        %262 = vrot.lane.b32.xlu0 %v212, 126
        %v263 = vpop.permute.xlu0 %262
        %264 = vrot.lane.b32.xlu0 %v213, 126
        %v265 = vpop.permute.xlu0 %264
        %266 = vrot.lane.b32.xlu0 %v214, 126
        %v267 = vpop.permute.xlu0 %266
        %268 = vrot.lane.b32.xlu0 %v215, 126
        %v269 = vpop.permute.xlu0 %268
        %270 = vrot.lane.b32.xlu0 %v216, 126
        %v271 = vpop.permute.xlu0 %270
        %272 = vrot.lane.b32.xlu0 %v217, 126
        %v273 = vpop.permute.xlu0 %272
        %274 = vrot.lane.b32.xlu0 %v218, 126
        %v275 = vpop.permute.xlu0 %274
        %276 = vrot.lane.b32.xlu0 %v219, 126
        %v277 = vpop.permute.xlu0 %276
        %278 = vrot.lane.b32.xlu0 %v220, 126
        %v279 = vpop.permute.xlu0 %278
        %vm280 = vcmask 1031168
        %v281 = vsel %vm280, %v263, %v265
        %v282 = vsel %vm280, %v265, %v267
        %v283 = vsel %vm280, %v267, %v269
        %v284 = vsel %vm280, %v269, %v271
        %v285 = vsel %vm280, %v271, %v273
        %v286 = vsel %vm280, %v273, %v275
        %v287 = vsel %vm280, %v275, %v277
        %v288 = vsel %vm280, %v277, %v279
        %297 = vrot.lane.b32.xlu0 %v212, 95
        %v298 = vpop.permute.xlu0 %297
        %299 = vrot.lane.b32.xlu0 %v213, 95
        %v300 = vpop.permute.xlu0 %299
        %301 = vrot.lane.b32.xlu0 %v214, 95
        %v302 = vpop.permute.xlu0 %301
        %303 = vrot.lane.b32.xlu0 %v215, 95
        %v304 = vpop.permute.xlu0 %303
        %305 = vrot.lane.b32.xlu0 %v216, 95
        %v306 = vpop.permute.xlu0 %305
        %307 = vrot.lane.b32.xlu0 %v217, 95
        %v308 = vpop.permute.xlu0 %307
        %309 = vrot.lane.b32.xlu0 %v218, 95
        %v310 = vpop.permute.xlu0 %309
        %311 = vrot.lane.b32.xlu0 %v219, 95
        %v312 = vpop.permute.xlu0 %311
        %313 = vrot.lane.b32.xlu0 %v220, 95
        %v314 = vpop.permute.xlu0 %313
        %vm315 = vcmask 777216
        %v316 = vsel %vm315, %v298, %v300
        %v317 = vsel %vm315, %v300, %v302
        %v318 = vsel %vm315, %v302, %v304
        %v319 = vsel %vm315, %v304, %v306
        %v320 = vsel %vm315, %v306, %v308
        %v321 = vsel %vm315, %v308, %v310
        %v322 = vsel %vm315, %v310, %v312
        %v323 = vsel %vm315, %v312, %v314
        %332 = vrot.lane.b32.xlu0 %v212, 94
        %v333 = vpop.permute.xlu0 %332
        %334 = vrot.lane.b32.xlu0 %v213, 94
        %v335 = vpop.permute.xlu0 %334
        %336 = vrot.lane.b32.xlu0 %v214, 94
        %v337 = vpop.permute.xlu0 %336
        %338 = vrot.lane.b32.xlu0 %v215, 94
        %v339 = vpop.permute.xlu0 %338
        %340 = vrot.lane.b32.xlu0 %v216, 94
        %v341 = vpop.permute.xlu0 %340
        %342 = vrot.lane.b32.xlu0 %v217, 94
        %v343 = vpop.permute.xlu0 %342
        %344 = vrot.lane.b32.xlu0 %v218, 94
        %v345 = vpop.permute.xlu0 %344
        %346 = vrot.lane.b32.xlu0 %v219, 94
        %v347 = vpop.permute.xlu0 %346
        %348 = vrot.lane.b32.xlu0 %v220, 94
        %v349 = vpop.permute.xlu0 %348
        %vm350 = vcmask 769024
        %v351 = vsel %vm350, %v333, %v335
        %v352 = vsel %vm350, %v335, %v337
        %v353 = vsel %vm350, %v337, %v339
        %v354 = vsel %vm350, %v339, %v341
        %v355 = vsel %vm350, %v341, %v343
        %v356 = vsel %vm350, %v343, %v345
        %v357 = vsel %vm350, %v345, %v347
        %v358 = vsel %vm350, %v347, %v349
        %367 = vrot.lane.b32.xlu0 %v212, 93
        %v368 = vpop.permute.xlu0 %367
        %369 = vrot.lane.b32.xlu0 %v213, 93
        %v370 = vpop.permute.xlu0 %369
        %371 = vrot.lane.b32.xlu0 %v214, 93
        %v372 = vpop.permute.xlu0 %371
        %373 = vrot.lane.b32.xlu0 %v215, 93
        %v374 = vpop.permute.xlu0 %373
        %375 = vrot.lane.b32.xlu0 %v216, 93
        %v376 = vpop.permute.xlu0 %375
        %377 = vrot.lane.b32.xlu0 %v217, 93
        %v378 = vpop.permute.xlu0 %377
        %379 = vrot.lane.b32.xlu0 %v218, 93
        %v380 = vpop.permute.xlu0 %379
        %381 = vrot.lane.b32.xlu0 %v219, 93
        %v382 = vpop.permute.xlu0 %381
        %383 = vrot.lane.b32.xlu0 %v220, 93
        %v384 = vpop.permute.xlu0 %383
        %vm385 = vcmask 760832
        %v386 = vsel %vm385, %v368, %v370
        %v387 = vsel %vm385, %v370, %v372
        %v388 = vsel %vm385, %v372, %v374
        %v389 = vsel %vm385, %v374, %v376
        %v390 = vsel %vm385, %v376, %v378
        %v391 = vsel %vm385, %v378, %v380
        %v392 = vsel %vm385, %v380, %v382
        %v393 = vsel %vm385, %v382, %v384
        %402 = vrot.lane.b32.xlu0 %v212, 62
        %v403 = vpop.permute.xlu0 %402
        %404 = vrot.lane.b32.xlu0 %v213, 62
        %v405 = vpop.permute.xlu0 %404
        %406 = vrot.lane.b32.xlu0 %v214, 62
        %v407 = vpop.permute.xlu0 %406
        %408 = vrot.lane.b32.xlu0 %v215, 62
        %v409 = vpop.permute.xlu0 %408
        %410 = vrot.lane.b32.xlu0 %v216, 62
        %v411 = vpop.permute.xlu0 %410
        %412 = vrot.lane.b32.xlu0 %v217, 62
        %v413 = vpop.permute.xlu0 %412
        %414 = vrot.lane.b32.xlu0 %v218, 62
        %v415 = vpop.permute.xlu0 %414
        %416 = vrot.lane.b32.xlu0 %v219, 62
        %v417 = vpop.permute.xlu0 %416
        %418 = vrot.lane.b32.xlu0 %v220, 62
        %v419 = vpop.permute.xlu0 %418
        %vm420 = vcmask 506880
        %v421 = vsel %vm420, %v403, %v405
        %v422 = vsel %vm420, %v405, %v407
        %v423 = vsel %vm420, %v407, %v409
        %v424 = vsel %vm420, %v409, %v411
        %v425 = vsel %vm420, %v411, %v413
        %v426 = vsel %vm420, %v413, %v415
        %v427 = vsel %vm420, %v415, %v417
        %v428 = vsel %vm420, %v417, %v419
        %437 = vrot.lane.b32.xlu0 %v212, 61
        %v438 = vpop.permute.xlu0 %437
        %439 = vrot.lane.b32.xlu0 %v213, 61
        %v440 = vpop.permute.xlu0 %439
        %441 = vrot.lane.b32.xlu0 %v214, 61
        %v442 = vpop.permute.xlu0 %441
        %443 = vrot.lane.b32.xlu0 %v215, 61
        %v444 = vpop.permute.xlu0 %443
        %445 = vrot.lane.b32.xlu0 %v216, 61
        %v446 = vpop.permute.xlu0 %445
        %447 = vrot.lane.b32.xlu0 %v217, 61
        %v448 = vpop.permute.xlu0 %447
        %449 = vrot.lane.b32.xlu0 %v218, 61
        %v450 = vpop.permute.xlu0 %449
        %451 = vrot.lane.b32.xlu0 %v219, 61
        %v452 = vpop.permute.xlu0 %451
        %453 = vrot.lane.b32.xlu0 %v220, 61
        %v454 = vpop.permute.xlu0 %453
        %vm455 = vcmask 498688
        %v456 = vsel %vm455, %v438, %v440
        %v457 = vsel %vm455, %v440, %v442
        %v458 = vsel %vm455, %v442, %v444
        %v459 = vsel %vm455, %v444, %v446
        %v460 = vsel %vm455, %v446, %v448
        %v461 = vsel %vm455, %v448, %v450
        %v462 = vsel %vm455, %v450, %v452
        %v463 = vsel %vm455, %v452, %v454
        %472 = vrot.lane.b32.xlu0 %v212, 60
        %v473 = vpop.permute.xlu0 %472
        %474 = vrot.lane.b32.xlu0 %v213, 60
        %v475 = vpop.permute.xlu0 %474
        %476 = vrot.lane.b32.xlu0 %v214, 60
        %v477 = vpop.permute.xlu0 %476
        %478 = vrot.lane.b32.xlu0 %v215, 60
        %v479 = vpop.permute.xlu0 %478
        %480 = vrot.lane.b32.xlu0 %v216, 60
        %v481 = vpop.permute.xlu0 %480
        %482 = vrot.lane.b32.xlu0 %v217, 60
        %v483 = vpop.permute.xlu0 %482
        %484 = vrot.lane.b32.xlu0 %v218, 60
        %v485 = vpop.permute.xlu0 %484
        %486 = vrot.lane.b32.xlu0 %v219, 60
        %v487 = vpop.permute.xlu0 %486
        %488 = vrot.lane.b32.xlu0 %v220, 60
        %v489 = vpop.permute.xlu0 %488
        %vm490 = vcmask 490496
        %v491 = vsel %vm490, %v473, %v475
        %v492 = vsel %vm490, %v475, %v477
        %v493 = vsel %vm490, %v477, %v479
        %v494 = vsel %vm490, %v479, %v481
        %v495 = vsel %vm490, %v481, %v483
        %v496 = vsel %vm490, %v483, %v485
        %v497 = vsel %vm490, %v485, %v487
        %v498 = vsel %vm490, %v487, %v489
        %v507 = vld [vmem:[#allocation5] sm:$0xff]
        %vm508 = vcmask 588800
        %v510 = vsel %vm508, %v507, 0
        %512 = vmatprep.subr.mxu0 0.0
        %513 = vmatpush1.msra.mxu0 0.0
        %514 = vmatprep.subr.mxu0 0.0
        %515 = vmatpush1.msra.mxu0 0.0
        %516 = vmatprep.subr.mxu0 0.0
        %517 = vmatpush1.msra.mxu0 0.0
        %518 = vmatprep.subr.mxu0 0.0
        %519 = vmatpush1.msra.mxu0 0.0
        %520 = vmatprep.subr.mxu0 0.0
        %521 = vmatpush1.msra.mxu0 0.0
        %522 = vmatprep.subr.mxu0 0.0
        %523 = vmatpush1.msra.mxu0 0.0
        %524 = vmatprep.subr.mxu0 0.0
        %525 = vmatpush1.msra.mxu0 0.0
        %526 = vmatprep.subr.mxu0 %v492
        %527 = vmatpush1.msra.mxu0 %v491
        %528 = vmatprep.subr.mxu0 %v457
        %529 = vmatpush1.msra.mxu0 %v456
        %530 = vmatprep.subr.mxu0 %v422
        %531 = vmatpush1.msra.mxu0 %v421
        %532 = vmatprep.subr.mxu0 %v387
        %533 = vmatpush1.msra.mxu0 %v386
        %534 = vmatprep.subr.mxu0 %v352
        %535 = vmatpush1.msra.mxu0 %v351
        %536 = vmatprep.subr.mxu0 %v317
        %537 = vmatpush1.msra.mxu0 %v316
        %538 = vmatprep.subr.mxu0 %v282
        %539 = vmatpush1.msra.mxu0 %v281
        %540 = vmatprep.subr.mxu0 %v247
        %541 = vmatpush1.msra.mxu0 %v246
        %542 = vmatprep.subr.mxu0 %v213
        %543 = vmatpush1.msra.mxu0 %v212
        %544 = vmatprep.subr.mxu0 0.0
        %545 = vmatpush2.msra.mxu0 0.0
        %546 = vmatprep.subr.mxu0 0.0
        %547 = vmatpush2.msra.mxu0 0.0
        %548 = vmatprep.subr.mxu0 0.0
        %549 = vmatpush2.msra.mxu0 0.0
        %550 = vmatprep.subr.mxu0 0.0
        %551 = vmatpush2.msra.mxu0 0.0
        %552 = vmatprep.subr.mxu0 0.0
        %553 = vmatpush2.msra.mxu0 0.0
        %554 = vmatprep.subr.mxu0 0.0
        %555 = vmatpush2.msra.mxu0 0.0
        %556 = vmatprep.subr.mxu0 0.0
        %557 = vmatpush2.msra.mxu0 0.0
        %558 = vmatprep.subr.mxu0 0.0
        %559 = vmatpush2.msra.mxu0 0.0
        %560 = vmatprep.subr.mxu0 0.0
        %561 = vmatpush2.msra.mxu0 0.0
        %562 = vmatprep.subr.mxu0 0.0
        %563 = vmatpush2.msra.mxu0 0.0
        %564 = vmatprep.subr.mxu0 0.0
        %565 = vmatpush2.msra.mxu0 0.0
        %566 = vmatprep.subr.mxu0 0.0
        %567 = vmatpush2.msra.mxu0 0.0
        %568 = vmatprep.subr.mxu0 0.0
        %569 = vmatpush2.msra.mxu0 0.0
        %570 = vmatprep.subr.mxu0 0.0
        %571 = vmatpush2.msra.mxu0 0.0
        %572 = vmatprep.subr.mxu0 0.0
        %573 = vmatpush2.msra.mxu0 0.0
        %574 = vmatprep.subr.mxu0 0.0
        %575 = vmatpush2.msra.mxu0 0.0
        %576 = vmatprep.mubr.f32.mxu0 0.0
        %577 = vmatmul.mubr.f32.gmra.mxu0 %v510
        %v578 = vpop.f32.mrf.mxu0
        %v579 = vadd.f32 0.0, %v578
        %v580 = vpop.f32.mrf.mxu0
        %v581 = vadd.f32 0.0, %v580
        %582 = vdwg.mxu0
        %583 = vmatprep.subr.mxu0 0.0
        %584 = vmatpush1.msra.mxu0 0.0
        %585 = vmatprep.subr.mxu0 0.0
        %586 = vmatpush1.msra.mxu0 0.0
        %587 = vmatprep.subr.mxu0 0.0
        %588 = vmatpush1.msra.mxu0 0.0
        %589 = vmatprep.subr.mxu0 0.0
        %590 = vmatpush1.msra.mxu0 0.0
        %591 = vmatprep.subr.mxu0 0.0
        %592 = vmatpush1.msra.mxu0 0.0
        %593 = vmatprep.subr.mxu0 0.0
        %594 = vmatpush1.msra.mxu0 0.0
        %595 = vmatprep.subr.mxu0 0.0
        %596 = vmatpush1.msra.mxu0 0.0
        %597 = vmatprep.subr.mxu0 %v494
        %598 = vmatpush1.msra.mxu0 %v493
        %599 = vmatprep.subr.mxu0 %v459
        %600 = vmatpush1.msra.mxu0 %v458
        %601 = vmatprep.subr.mxu0 %v424
        %602 = vmatpush1.msra.mxu0 %v423
        %603 = vmatprep.subr.mxu0 %v389
        %604 = vmatpush1.msra.mxu0 %v388
        %605 = vmatprep.subr.mxu0 %v354
        %606 = vmatpush1.msra.mxu0 %v353
        %607 = vmatprep.subr.mxu0 %v319
        %608 = vmatpush1.msra.mxu0 %v318
        %609 = vmatprep.subr.mxu0 %v284
        %610 = vmatpush1.msra.mxu0 %v283
        %611 = vmatprep.subr.mxu0 %v249
        %612 = vmatpush1.msra.mxu0 %v248
        %613 = vmatprep.subr.mxu0 %v215
        %614 = vmatpush1.msra.mxu0 %v214
        %615 = vmatprep.subr.mxu0 0.0
        %616 = vmatpush2.msra.mxu0 0.0
        %617 = vmatprep.subr.mxu0 0.0
        %618 = vmatpush2.msra.mxu0 0.0
        %619 = vmatprep.subr.mxu0 0.0
        %620 = vmatpush2.msra.mxu0 0.0
        %621 = vmatprep.subr.mxu0 0.0
        %622 = vmatpush2.msra.mxu0 0.0
        %623 = vmatprep.subr.mxu0 0.0
        %624 = vmatpush2.msra.mxu0 0.0
        %625 = vmatprep.subr.mxu0 0.0
        %626 = vmatpush2.msra.mxu0 0.0
        %627 = vmatprep.subr.mxu0 0.0
        %628 = vmatpush2.msra.mxu0 0.0
        %629 = vmatprep.subr.mxu0 0.0
        %630 = vmatpush2.msra.mxu0 0.0
        %631 = vmatprep.subr.mxu0 0.0
        %632 = vmatpush2.msra.mxu0 0.0
        %633 = vmatprep.subr.mxu0 0.0
        %634 = vmatpush2.msra.mxu0 0.0
        %635 = vmatprep.subr.mxu0 0.0
        %636 = vmatpush2.msra.mxu0 0.0
        %637 = vmatprep.subr.mxu0 0.0
        %638 = vmatpush2.msra.mxu0 0.0
        %639 = vmatprep.subr.mxu0 0.0
        %640 = vmatpush2.msra.mxu0 0.0
        %641 = vmatprep.subr.mxu0 0.0
        %642 = vmatpush2.msra.mxu0 0.0
        %643 = vmatprep.subr.mxu0 0.0
        %644 = vmatpush2.msra.mxu0 0.0
        %645 = vmatprep.subr.mxu0 0.0
        %646 = vmatpush2.msra.mxu0 0.0
        %647 = vmatprep.mubr.f32.mxu0 0.0
        %648 = vmatmul.mubr.f32.gmra.mxu0 %v510
        %v649 = vpop.f32.mrf.mxu0
        %v650 = vadd.f32 0.0, %v649
        %v651 = vpop.f32.mrf.mxu0
        %v652 = vadd.f32 0.0, %v651
        %653 = vdwg.mxu0
        %654 = vmatprep.subr.mxu0 0.0
        %655 = vmatpush1.msra.mxu0 0.0
        %656 = vmatprep.subr.mxu0 0.0
        %657 = vmatpush1.msra.mxu0 0.0
        %658 = vmatprep.subr.mxu0 0.0
        %659 = vmatpush1.msra.mxu0 0.0
        %660 = vmatprep.subr.mxu0 0.0
        %661 = vmatpush1.msra.mxu0 0.0
        %662 = vmatprep.subr.mxu0 0.0
        %663 = vmatpush1.msra.mxu0 0.0
        %664 = vmatprep.subr.mxu0 0.0
        %665 = vmatpush1.msra.mxu0 0.0
        %666 = vmatprep.subr.mxu0 0.0
        %667 = vmatpush1.msra.mxu0 0.0
        %668 = vmatprep.subr.mxu0 %v496
        %669 = vmatpush1.msra.mxu0 %v495
        %670 = vmatprep.subr.mxu0 %v461
        %671 = vmatpush1.msra.mxu0 %v460
        %672 = vmatprep.subr.mxu0 %v426
        %673 = vmatpush1.msra.mxu0 %v425
        %674 = vmatprep.subr.mxu0 %v391
        %675 = vmatpush1.msra.mxu0 %v390
        %676 = vmatprep.subr.mxu0 %v356
        %677 = vmatpush1.msra.mxu0 %v355
        %678 = vmatprep.subr.mxu0 %v321
        %679 = vmatpush1.msra.mxu0 %v320
        %680 = vmatprep.subr.mxu0 %v286
        %681 = vmatpush1.msra.mxu0 %v285
        %682 = vmatprep.subr.mxu0 %v251
        %683 = vmatpush1.msra.mxu0 %v250
        %684 = vmatprep.subr.mxu0 %v217
        %685 = vmatpush1.msra.mxu0 %v216
        %686 = vmatprep.subr.mxu0 0.0
        %687 = vmatpush2.msra.mxu0 0.0
        %688 = vmatprep.subr.mxu0 0.0
        %689 = vmatpush2.msra.mxu0 0.0
        %690 = vmatprep.subr.mxu0 0.0
        %691 = vmatpush2.msra.mxu0 0.0
        %692 = vmatprep.subr.mxu0 0.0
        %693 = vmatpush2.msra.mxu0 0.0
        %694 = vmatprep.subr.mxu0 0.0
        %695 = vmatpush2.msra.mxu0 0.0
        %696 = vmatprep.subr.mxu0 0.0
        %697 = vmatpush2.msra.mxu0 0.0
        %698 = vmatprep.subr.mxu0 0.0
        %699 = vmatpush2.msra.mxu0 0.0
        %700 = vmatprep.subr.mxu0 0.0
        %701 = vmatpush2.msra.mxu0 0.0
        %702 = vmatprep.subr.mxu0 0.0
        %703 = vmatpush2.msra.mxu0 0.0
        %704 = vmatprep.subr.mxu0 0.0
        %705 = vmatpush2.msra.mxu0 0.0
        %706 = vmatprep.subr.mxu0 0.0
        %707 = vmatpush2.msra.mxu0 0.0
        %708 = vmatprep.subr.mxu0 0.0
        %709 = vmatpush2.msra.mxu0 0.0
        %710 = vmatprep.subr.mxu0 0.0
        %711 = vmatpush2.msra.mxu0 0.0
        %712 = vmatprep.subr.mxu0 0.0
        %713 = vmatpush2.msra.mxu0 0.0
        %714 = vmatprep.subr.mxu0 0.0
        %715 = vmatpush2.msra.mxu0 0.0
        %716 = vmatprep.subr.mxu0 0.0
        %717 = vmatpush2.msra.mxu0 0.0
        %718 = vmatprep.mubr.f32.mxu0 0.0
        %719 = vmatmul.mubr.f32.gmra.mxu0 %v510
        %v720 = vpop.f32.mrf.mxu0
        %v721 = vadd.f32 0.0, %v720
        %v722 = vpop.f32.mrf.mxu0
        %v723 = vadd.f32 0.0, %v722
        %724 = vdwg.mxu0
        %725 = vmatprep.subr.mxu0 0.0
        %726 = vmatpush1.msra.mxu0 0.0
        %727 = vmatprep.subr.mxu0 0.0
        %728 = vmatpush1.msra.mxu0 0.0
        %729 = vmatprep.subr.mxu0 0.0
        %730 = vmatpush1.msra.mxu0 0.0
        %731 = vmatprep.subr.mxu0 0.0
        %732 = vmatpush1.msra.mxu0 0.0
        %733 = vmatprep.subr.mxu0 0.0
        %734 = vmatpush1.msra.mxu0 0.0
        %735 = vmatprep.subr.mxu0 0.0
        %736 = vmatpush1.msra.mxu0 0.0
        %737 = vmatprep.subr.mxu0 0.0
        %738 = vmatpush1.msra.mxu0 0.0
        %739 = vmatprep.subr.mxu0 %v498
        %740 = vmatpush1.msra.mxu0 %v497
        %741 = vmatprep.subr.mxu0 %v463
        %742 = vmatpush1.msra.mxu0 %v462
        %743 = vmatprep.subr.mxu0 %v428
        %744 = vmatpush1.msra.mxu0 %v427
        %745 = vmatprep.subr.mxu0 %v393
        %746 = vmatpush1.msra.mxu0 %v392
        %747 = vmatprep.subr.mxu0 %v358
        %748 = vmatpush1.msra.mxu0 %v357
        %749 = vmatprep.subr.mxu0 %v323
        %750 = vmatpush1.msra.mxu0 %v322
        %751 = vmatprep.subr.mxu0 %v288
        %752 = vmatpush1.msra.mxu0 %v287
        %753 = vmatprep.subr.mxu0 %v244
        %754 = vmatpush1.msra.mxu0 %v252
        %755 = vmatprep.subr.mxu0 %v219
        %756 = vmatpush1.msra.mxu0 %v218
        %757 = vmatprep.subr.mxu0 0.0
        %758 = vmatpush2.msra.mxu0 0.0
        %759 = vmatprep.subr.mxu0 0.0
        %760 = vmatpush2.msra.mxu0 0.0
        %761 = vmatprep.subr.mxu0 0.0
        %762 = vmatpush2.msra.mxu0 0.0
        %763 = vmatprep.subr.mxu0 0.0
        %764 = vmatpush2.msra.mxu0 0.0
        %765 = vmatprep.subr.mxu0 0.0
        %766 = vmatpush2.msra.mxu0 0.0
        %767 = vmatprep.subr.mxu0 0.0
        %768 = vmatpush2.msra.mxu0 0.0
        %769 = vmatprep.subr.mxu0 0.0
        %770 = vmatpush2.msra.mxu0 0.0
        %771 = vmatprep.subr.mxu0 0.0
        %772 = vmatpush2.msra.mxu0 0.0
        %773 = vmatprep.subr.mxu0 0.0
        %774 = vmatpush2.msra.mxu0 0.0
        %775 = vmatprep.subr.mxu0 0.0
        %776 = vmatpush2.msra.mxu0 0.0
        %777 = vmatprep.subr.mxu0 0.0
        %778 = vmatpush2.msra.mxu0 0.0
        %779 = vmatprep.subr.mxu0 0.0
        %780 = vmatpush2.msra.mxu0 0.0
        %781 = vmatprep.subr.mxu0 0.0
        %782 = vmatpush2.msra.mxu0 0.0
        %783 = vmatprep.subr.mxu0 0.0
        %784 = vmatpush2.msra.mxu0 0.0
        %785 = vmatprep.subr.mxu0 0.0
        %786 = vmatpush2.msra.mxu0 0.0
        %787 = vmatprep.subr.mxu0 0.0
        %788 = vmatpush2.msra.mxu0 0.0
        %789 = vmatprep.mubr.f32.mxu0 0.0
        %790 = vmatmul.mubr.f32.gmra.mxu0 %v510
        %v791 = vpop.f32.mrf.mxu0
        %v792 = vadd.f32 0.0, %v791
        %v793 = vpop.f32.mrf.mxu0
        %v794 = vadd.f32 0.0, %v793
        %795 = vdwg.mxu0
        %v796 = vld [vmem:[#allocation7] sm:$0xff]
        %v798 = vlaneseq
        %v799 = vshrl.u32 %v798, 7
        %v800 = vsub.s32 0, %v799
        %v801 = vrot.slane %v796, %v800
        %v802 = vlaneseq
        %v803 = vshrl.u32 %v802, 7
        %v804 = vsub.s32 1, %v803
        %v805 = vrot.slane %v796, %v804
        %v806 = vlaneseq
        %v807 = vshrl.u32 %v806, 7
        %v808 = vsub.s32 2, %v807
        %v809 = vrot.slane %v796, %v808
        %v810 = vlaneseq
        %v811 = vshrl.u32 %v810, 7
        %v812 = vsub.s32 3, %v811
        %v813 = vrot.slane %v796, %v812
        %v814 = vlaneseq
        %v815 = vshrl.u32 %v814, 7
        %v816 = vsub.s32 4, %v815
        %v817 = vrot.slane %v796, %v816
        %v818 = vlaneseq
        %v819 = vshrl.u32 %v818, 7
        %v820 = vsub.s32 5, %v819
        %v821 = vrot.slane %v796, %v820
        %v822 = vlaneseq
        %v823 = vshrl.u32 %v822, 7
        %v824 = vsub.s32 6, %v823
        %v825 = vrot.slane %v796, %v824
        %v826 = vlaneseq
        %v827 = vshrl.u32 %v826, 7
        %v828 = vsub.s32 7, %v827
        %v829 = vrot.slane %v796, %v828
        %v838 = vmul.f32 %v579, %v801
        %v839 = vmul.f32 %v581, %v805
        %v840 = vmul.f32 %v650, %v809
        %v841 = vmul.f32 %v652, %v813
        %v842 = vmul.f32 %v721, %v817
        %v843 = vmul.f32 %v723, %v821
        %v844 = vmul.f32 %v792, %v825
        %v845 = vmul.f32 %v794, %v829
        %v846 = vadd.f32 %v838, %v839
        %v847 = vadd.f32 %v846, %v840
        %v848 = vadd.f32 %v847, %v841
        %v849 = vadd.f32 %v848, %v842
        %v850 = vadd.f32 %v849, %v843
        %v851 = vadd.f32 %v850, %v844
        %v852 = vsel %vm245, %v845, 0.0
        %v853 = vadd.f32 %v851, %v852
        %854 = vadd.xlane.f32.xlu0 %v853
        %v855 = vpop.xlane.xlu0 %854
        %v856 = vmul.f32 %v855, 0.0010405828
        %v857 = vsub.f32 %v579, %v856
        %v858 = vsub.f32 %v581, %v856
        %v859 = vsub.f32 %v650, %v856
        %v860 = vsub.f32 %v652, %v856
        %v861 = vsub.f32 %v721, %v856
        %v862 = vsub.f32 %v723, %v856
        %v863 = vsub.f32 %v792, %v856
        %v864 = vsub.f32 %v794, %v856
        %v865 = vmul.f32 %v857, %v801
        %v866 = vmul.f32 %v858, %v805
        %v867 = vmul.f32 %v859, %v809
        %v868 = vmul.f32 %v860, %v813
        %v869 = vmul.f32 %v861, %v817
        %v870 = vmul.f32 %v862, %v821
        %v871 = vmul.f32 %v863, %v825
        %v872 = vmul.f32 %v864, %v829
        %v873 = vmul.f32 %v865, %v865
        %v874 = vmul.f32 %v866, %v866
        %v875 = vmul.f32 %v867, %v867
        %v876 = vmul.f32 %v868, %v868
        %v877 = vmul.f32 %v869, %v869
        %v878 = vmul.f32 %v870, %v870
        %v879 = vmul.f32 %v871, %v871
        %v880 = vmul.f32 %v872, %v872
        %v881 = vadd.f32 %v873, %v874
        %v882 = vadd.f32 %v881, %v875
        %v883 = vadd.f32 %v882, %v876
        %v884 = vadd.f32 %v883, %v877
        %v885 = vadd.f32 %v884, %v878
        %v886 = vadd.f32 %v885, %v879
        %v887 = vsel %vm245, %v880, 0.0
        %v888 = vadd.f32 %v886, %v887
        %889 = vadd.xlane.f32.xlu0 %v888
        %v890 = vpop.xlane.xlu0 %889
        %v891 = vmul.f32 %v890, 0.0010405828
        %v892 = vadd.f32 %v891, 1e-05
        %v893 = vrsqrt.pop %v892
        %v894 = vmul.f32 %v865, %v893
        %v895 = vmul.f32 %v866, %v893
        %v896 = vmul.f32 %v867, %v893
        %v897 = vmul.f32 %v868, %v893
        %v898 = vmul.f32 %v869, %v893
        %v899 = vmul.f32 %v870, %v893
        %v900 = vmul.f32 %v871, %v893
        %v901 = vmul.f32 %v872, %v893
        %v902 = vmax.f32 %v894, 0.0
        %v903 = vmax.f32 %v895, 0.0
        %v904 = vmax.f32 %v896, 0.0
        %v905 = vmax.f32 %v897, 0.0
        %v906 = vmax.f32 %v898, 0.0
        %v907 = vmax.f32 %v899, 0.0
        %v908 = vmax.f32 %v900, 0.0
        %v909 = vmax.f32 %v901, 0.0
        %910 = vst [vmem:[%s211] sm:$0xff] %v902
        %911 = vst [vmem:[%s211 + $0x8] sm:$0xff] %v903
        %912 = vst [vmem:[%s211 + $0x10] sm:$0xff] %v904
        %913 = vst [vmem:[%s211 + $0x18] sm:$0xff] %v905
        %914 = vst [vmem:[%s211 + $0x20] sm:$0xff] %v906
        %915 = vst [vmem:[%s211 + $0x28] sm:$0xff] %v907
        %916 = vst [vmem:[%s211 + $0x30] sm:$0xff] %v908
        %917 = vst.msk [vmem:[%s211 + $0x38] sm:$0xff] %vm245, %v909
        %s918 = sand.u32 %s97, 1
        %s919 = scalar_lea.sflag [#allocation4], %s918
        %s920 = sand.u32 %s97, 1
        %s921 = smul.addr %s920, 64
        %s922 = scalar_lea.vmem [#allocation8], %s921
        // Predicated region
        $region45: #{tpu_custom_call.1} parent=31 // pred_check
          %p923 = pneg %p107
        $region46: #{tpu_custom_call.1} parent=31 // pred_check_branch
          %925 = sbr.rel (%p923) target = $region48
        $region47: #{tpu_custom_call.1} parent=31 // pred_region
          %s927 = ssub.s32 1024, 1024
          %928 = vsyncadd %s919, %s927
          %s929 = smul.addr %s21, 8
          %s930 = smul.addr %s929, 128
          %s931 = scalar_lea.hbm %s3, %s930
          %s933 = sshll.u32 %s922, 4
          %s934 = int_to_ptr.vmem [resolvable:$true] %s933
          %936 = dma.vmem_to_hbm [thread:$0]  %s934, 1024, %s931, %s919
        $region48: #{tpu_custom_call.1} parent=31 // pred_fallthru
          _
      $region32: #{tpu_custom_call.1} parent=5 // pred_fallthru
        _
      %p937 = scmp.le.s32.totalorder 2, %s16
      // Predicated region
      $region49: #{tpu_custom_call.1} parent=5 // pred_check
        %p938 = pneg %p937
      $region50: #{tpu_custom_call.1} parent=5 // pred_check_branch
        %940 = sbr.rel (%p938) target = $region52
      $region51: #{tpu_custom_call.1} parent=5 // pred_region
        %s941 = ssub.s32 %s16, 2
        // Predicated region
        $region53: #{tpu_custom_call.1} parent=51 // pred_check
          %p942 = pneg %p113
        $region54: #{tpu_custom_call.1} parent=51 // pred_check_branch
          %944 = sbr.rel (%p942) target = $region56
        $region55: #{tpu_custom_call.1} parent=51 // pred_region
          %s945 = sand.u32 %s98, 1
          %s946 = scalar_lea.sflag [#allocation4], %s945
          %s947 = sand.u32 %s98, 1
          %s948 = smul.addr %s947, 64
          %s949 = scalar_lea.vmem [#allocation8], %s948
          %950 = dma.done %s946, 1024
        $region56: #{tpu_custom_call.1} parent=51 // pred_fallthru
          _
      $region52: #{tpu_custom_call.1} parent=5 // pred_fallthru
        _
    $region6: #{tpu_custom_call.1} parent=1 // loop_footer
      %s20 = sadd.s32 1, %s16
    $region7: #{tpu_custom_call.1} parent=1 // loop_footer_branch
      %15 = sbr.rel target = $region3
    $region8: #{tpu_custom_call.1} parent=1 // loop_exit
      _
    %951 = vsyncpa [#allocation3], 1
    %s952 = scalar_lea.sflag [#allocation3], 1
    %953 = vsyncpa %s952, 1
    %954 = vsyncpa [#allocation6], 1
    %955 = vsyncpa [#allocation4], 1
    %s956 = scalar_lea.sflag [#allocation4], 1
    %957 = vsyncpa %s956, 1

</llo_original>
